<compile_context>
chip_gen: v6e
topology: v6e:2x2x1
jax: 0.10.0
libtpu: 0.0.40
codegen_flags: <defaults>
</compile_context>

<pallas_src>
from functools import partial

import jax
import jax.numpy as jnp
from jax.experimental import pallas as pl
from jax.experimental.pallas import tpu as pltpu

INPUT_DIM = 13
H1, H2, H3, OUT = 100, 100, 50, 1


def _round_up(n, m):
    return ((n + m - 1) // m) * m


def _mlp_kernel(x_ref, w1_ref, b1_ref, w2_ref, b2_ref, w3_ref, b3_ref,
                w4_ref, b4_ref, o_ref):
    # x_ref: (bt, 13) f32. Cast activations to bf16 for the MXU, accumulate in f32,
    # do bias-add / ReLU in f32, re-cast before each subsequent dot.
    x = x_ref[...].astype(jnp.bfloat16)

    h = jnp.dot(x, w1_ref[...], preferred_element_type=jnp.float32) + b1_ref[...]
    h = jnp.maximum(h, 0.0).astype(jnp.bfloat16)

    h = jnp.dot(h, w2_ref[...], preferred_element_type=jnp.float32) + b2_ref[...]
    h = jnp.maximum(h, 0.0).astype(jnp.bfloat16)

    h = jnp.dot(h, w3_ref[...], preferred_element_type=jnp.float32) + b3_ref[...]
    h = jnp.maximum(h, 0.0).astype(jnp.bfloat16)

    # Final layer on the MXU: (bt, 50) @ (50, 1) -> (bt, 1). Tiny masked stores, no XLU.
    y = jnp.dot(h, w4_ref[...], preferred_element_type=jnp.float32) + b4_ref[...]
    o_ref[...] = y.astype(o_ref.dtype)


def _choose_tile(B, batch_tile):
    """Tile multiple of 128, >= 2 grid steps for large B (v7x dual-TC), or one
    full-array block for small B (block == full dim is always legal)."""
    bt = min(_round_up(batch_tile, 128), _round_up(max(-(-B // 2), 1), 128))
    if bt >= B:
        return B, 1
    return bt, -(-B // bt)  # cdiv


@partial(jax.jit, static_argnames=("batch_tile",))
def bike_nn_forward(x, params, *, batch_tile=4096):
    """x: any shape reshapeable to (-1, 13) (like xb.view(-1, 13)).
    params: prepared params (see prepare_params): bf16 weights stored (in, out)
            with w4 as (50, 1); f32 biases (1, out). Returns (B, 1) float32."""
    x2 = x.reshape(-1, INPUT_DIM).astype(jnp.float32)
    B = x2.shape[0]
    bt, grid_len = _choose_tile(B, batch_tile)

    w1, b1 = params["w1"], params["b1"]
    w2, b2 = params["w2"], params["b2"]
    w3, b3 = params["w3"], params["b3"]
    w4, b4 = params["w4"], params["b4"]

    full = lambda arr: pl.BlockSpec(arr.shape, lambda i: (0, 0))

    flops = 2 * B * (INPUT_DIM * H1 + H1 * H2 + H2 * H3 + H3 * OUT)
    w_bytes = 2 * (INPUT_DIM * H1 + H1 * H2 + H2 * H3 + H3 * OUT) \
        + 4 * (H1 + H2 + H3 + OUT)
    cost = pl.CostEstimate(flops=flops, transcendentals=0,
                           bytes_accessed=4 * B * (INPUT_DIM + OUT) + w_bytes)

    out = pl.pallas_call(
        _mlp_kernel,
        out_shape=jax.ShapeDtypeStruct((B, OUT), jnp.float32),
        grid_spec=pltpu.PrefetchScalarGridSpec(
            num_scalar_prefetch=0,
            grid=(grid_len,),
            in_specs=[
                pl.BlockSpec((bt, INPUT_DIM), lambda i: (i, 0)),  # x: contiguous rows
                full(w1), full(b1),
                full(w2), full(b2),
                full(w3), full(b3),
                full(w4), full(b4),
            ],
            out_specs=pl.BlockSpec((bt, OUT), lambda i: (i, 0)),
        ),
        compiler_params=pltpu.CompilerParams(
            dimension_semantics=("parallel",),
            vmem_limit_bytes=32 * 1024 * 1024),
        cost_estimate=cost,
    )(x2, w1, b1, w2, b2, w3, b3, w4, b4)

    return out


def init_params(key):
    """Deterministic f32 init mimicking nn.Linear's uniform(-1/sqrt(fan_in), +).
    Weights stored (in, out); w4 stored (50, 1)."""
    def linear(k, fan_in, fan_out):
        kw, kb = jax.random.split(k)
        bound = 1.0 / jnp.sqrt(fan_in)
        w = jax.random.uniform(kw, (fan_in, fan_out), jnp.float32, -bound, bound)
        b = jax.random.uniform(kb, (1, fan_out), jnp.float32, -bound, bound)
        return w, b

    k1, k2, k3, k4 = jax.random.split(key, 4)
    w1, b1 = linear(k1, INPUT_DIM, H1)
    w2, b2 = linear(k2, H1, H2)
    w3, b3 = linear(k3, H2, H3)
    w4, b4 = linear(k4, H3, OUT)          # (50, 1)
    return {"w1": w1, "b1": b1, "w2": w2, "b2": b2,
            "w3": w3, "b3": b3, "w4": w4, "b4": b4}


def prepare_params(params):
    """One-time prep hoisted out of the per-call path: bf16 weights, f32 biases."""
    return {
        "w1": params["w1"].astype(jnp.bfloat16),
        "w2": params["w2"].astype(jnp.bfloat16),
        "w3": params["w3"].astype(jnp.bfloat16),
        "w4": params["w4"].astype(jnp.bfloat16),
        "b1": params["b1"].astype(jnp.float32),
        "b2": params["b2"].astype(jnp.float32),
        "b3": params["b3"].astype(jnp.float32),
        "b4": params["b4"].astype(jnp.float32),
    }


def bike_nn_reference(x, params):
    """Pure-JAX f32 reference matching the PyTorch forward."""
    x = x.reshape(-1, INPUT_DIM)
    h = jnp.maximum(x @ params["w1"] + params["b1"], 0.0)
    h = jnp.maximum(h @ params["w2"] + params["b2"], 0.0)
    h = jnp.maximum(h @ params["w3"] + params["b3"], 0.0)
    return h @ params["w4"] + params["b4"]


if __name__ == "__main__":
    key = jax.random.PRNGKey(0)
    kp, kx = jax.random.split(key)
    params_f32 = init_params(kp)
    params = prepare_params(params_f32)

    # Small primary test (batch=8, 13 features): single full-array block.
    batch = 8
    x = jax.random.normal(kx, (batch, INPUT_DIM), jnp.float32)
    out = jax.block_until_ready(bike_nn_forward(x, params))
    ref = bike_nn_reference(x, params_f32)
    assert out.shape == (batch, OUT)
    # bf16 matmul operands -> relaxed tolerance vs the f32 reference.
    assert jnp.allclose(out, ref, atol=5e-2, rtol=5e-2), \
        f"max abs err {jnp.max(jnp.abs(out - ref))}"

    # Multi-step grid + partial tail block (B=1000 not a multiple of bt=256).
    x2 = jax.random.normal(jax.random.PRNGKey(1), (1000, INPUT_DIM), jnp.float32)
    out2 = jax.block_until_ready(bike_nn_forward(x2, params, batch_tile=256))
    ref2 = bike_nn_reference(x2, params_f32)
    assert out2.shape == (1000, OUT)
    assert jnp.allclose(out2, ref2, atol=5e-2, rtol=5e-2), \
        f"max abs err {jnp.max(jnp.abs(out2 - ref2))}"
    assert jnp.all(jnp.isfinite(out2))

    print("KERNEL_OK")
</pallas_src>

<mosaic_0001>
module attributes {stable_mosaic.version = 11 : i64} {
  func.func @_mlp_kernel(%arg0: i32, %arg1: memref<8x13xf32, #tpu.memory_space<vmem>>, %arg2: memref<13x100xbf16, #tpu.memory_space<vmem>>, %arg3: memref<1x100xf32, #tpu.memory_space<vmem>>, %arg4: memref<100x100xbf16, #tpu.memory_space<vmem>>, %arg5: memref<1x100xf32, #tpu.memory_space<vmem>>, %arg6: memref<100x50xbf16, #tpu.memory_space<vmem>>, %arg7: memref<1x50xf32, #tpu.memory_space<vmem>>, %arg8: memref<50x1xbf16, #tpu.memory_space<vmem>>, %arg9: memref<1x1xf32, #tpu.memory_space<vmem>>, %arg10: memref<8x1xf32, #tpu.memory_space<vmem>>) attributes {dimension_semantics = [#tpu.dimension_semantics<parallel>], iteration_bounds = array<i64: 1>, scalar_prefetch = 0 : i64, scratch_operands = 0 : i64, tpu.core_type = #tpu.core_type<tc>, window_params = [{transform_indices = @transform_0, window_bounds = array<i64: 8, 13>}, {pipeline_mode = #tpu.pipeline_mode<synchronous>, transform_indices = @transform_1, window_bounds = array<i64: 13, 100>}, {pipeline_mode = #tpu.pipeline_mode<synchronous>, transform_indices = @transform_2, window_bounds = array<i64: 1, 100>}, {pipeline_mode = #tpu.pipeline_mode<synchronous>, transform_indices = @transform_3, window_bounds = array<i64: 100, 100>}, {pipeline_mode = #tpu.pipeline_mode<synchronous>, transform_indices = @transform_4, window_bounds = array<i64: 1, 100>}, {pipeline_mode = #tpu.pipeline_mode<synchronous>, transform_indices = @transform_5, window_bounds = array<i64: 100, 50>}, {pipeline_mode = #tpu.pipeline_mode<synchronous>, transform_indices = @transform_6, window_bounds = array<i64: 1, 50>}, {pipeline_mode = #tpu.pipeline_mode<synchronous>, transform_indices = @transform_7, window_bounds = array<i64: 50, 1>}, {pipeline_mode = #tpu.pipeline_mode<synchronous>, transform_indices = @transform_8, window_bounds = array<i64: 1, 1>}, {transform_indices = @transform_9, window_bounds = array<i64: 8, 1>}]} {
    %c0 = arith.constant 0 : index
    %c0_0 = arith.constant 0 : index
    %0 = vector.load %arg1[%c0, %c0_0] : memref<8x13xf32, #tpu.memory_space<vmem>>, vector<8x13xf32>
    %1 = arith.truncf %0 : vector<8x13xf32> to vector<8x13xbf16>
    %c0_1 = arith.constant 0 : index
    %c0_2 = arith.constant 0 : index
    %2 = vector.load %arg2[%c0_1, %c0_2] : memref<13x100xbf16, #tpu.memory_space<vmem>>, vector<13x100xbf16>
    %cst = arith.constant dense<0.000000e+00> : vector<8x100xf32>
    %3 = tpu.matmul %1, %2, %cst {dimension_numbers = #tpu.dot_dimension_numbers<[1], [0], [0], [1], [0, 0, 1, 1], [], []>} : vector<8x13xbf16>, vector<13x100xbf16>, vector<8x100xf32> -> vector<8x100xf32>
    %c0_3 = arith.constant 0 : index
    %c0_4 = arith.constant 0 : index
    %4 = vector.load %arg3[%c0_3, %c0_4] : memref<1x100xf32, #tpu.memory_space<vmem>>, vector<1x100xf32>
    %5 = vector.broadcast %4 : vector<1x100xf32> to vector<8x100xf32>
    %6 = arith.addf %3, %5 : vector<8x100xf32>
    %cst_5 = arith.constant 0.000000e+00 : f32
    %7 = vector.broadcast %cst_5 : f32 to vector<8x100xf32>
    %8 = arith.maximumf %6, %7 : vector<8x100xf32>
    %9 = arith.truncf %8 : vector<8x100xf32> to vector<8x100xbf16>
    %c0_6 = arith.constant 0 : index
    %c0_7 = arith.constant 0 : index
    %10 = vector.load %arg4[%c0_6, %c0_7] : memref<100x100xbf16, #tpu.memory_space<vmem>>, vector<100x100xbf16>
    %cst_8 = arith.constant dense<0.000000e+00> : vector<8x100xf32>
    %11 = tpu.matmul %9, %10, %cst_8 {dimension_numbers = #tpu.dot_dimension_numbers<[1], [0], [0], [1], [0, 0, 1, 1], [], []>} : vector<8x100xbf16>, vector<100x100xbf16>, vector<8x100xf32> -> vector<8x100xf32>
    %c0_9 = arith.constant 0 : index
    %c0_10 = arith.constant 0 : index
    %12 = vector.load %arg5[%c0_9, %c0_10] : memref<1x100xf32, #tpu.memory_space<vmem>>, vector<1x100xf32>
    %13 = vector.broadcast %12 : vector<1x100xf32> to vector<8x100xf32>
    %14 = arith.addf %11, %13 : vector<8x100xf32>
    %cst_11 = arith.constant 0.000000e+00 : f32
    %15 = vector.broadcast %cst_11 : f32 to vector<8x100xf32>
    %16 = arith.maximumf %14, %15 : vector<8x100xf32>
    %17 = arith.truncf %16 : vector<8x100xf32> to vector<8x100xbf16>
    %c0_12 = arith.constant 0 : index
    %c0_13 = arith.constant 0 : index
    %18 = vector.load %arg6[%c0_12, %c0_13] : memref<100x50xbf16, #tpu.memory_space<vmem>>, vector<100x50xbf16>
    %cst_14 = arith.constant dense<0.000000e+00> : vector<8x50xf32>
    %19 = tpu.matmul %17, %18, %cst_14 {dimension_numbers = #tpu.dot_dimension_numbers<[1], [0], [0], [1], [0, 0, 1, 1], [], []>} : vector<8x100xbf16>, vector<100x50xbf16>, vector<8x50xf32> -> vector<8x50xf32>
    %c0_15 = arith.constant 0 : index
    %c0_16 = arith.constant 0 : index
    %20 = vector.load %arg7[%c0_15, %c0_16] : memref<1x50xf32, #tpu.memory_space<vmem>>, vector<1x50xf32>
    %21 = vector.broadcast %20 : vector<1x50xf32> to vector<8x50xf32>
    %22 = arith.addf %19, %21 : vector<8x50xf32>
    %cst_17 = arith.constant 0.000000e+00 : f32
    %23 = vector.broadcast %cst_17 : f32 to vector<8x50xf32>
    %24 = arith.maximumf %22, %23 : vector<8x50xf32>
    %25 = arith.truncf %24 : vector<8x50xf32> to vector<8x50xbf16>
    %c0_18 = arith.constant 0 : index
    %c0_19 = arith.constant 0 : index
    %26 = vector.load %arg8[%c0_18, %c0_19] : memref<50x1xbf16, #tpu.memory_space<vmem>>, vector<50x1xbf16>
    %cst_20 = arith.constant dense<0.000000e+00> : vector<8x1xf32>
    %27 = tpu.matmul %25, %26, %cst_20 {dimension_numbers = #tpu.dot_dimension_numbers<[1], [0], [0], [1], [0, 0, 1, 1], [], []>} : vector<8x50xbf16>, vector<50x1xbf16>, vector<8x1xf32> -> vector<8x1xf32>
    %c0_21 = arith.constant 0 : index
    %c0_22 = arith.constant 0 : index
    %28 = vector.load %arg9[%c0_21, %c0_22] : memref<1x1xf32, #tpu.memory_space<vmem>>, vector<1x1xf32>
    %29 = vector.broadcast %28 : vector<1x1xf32> to vector<8x1xf32>
    %30 = arith.addf %27, %29 : vector<8x1xf32>
    %c0_23 = arith.constant 0 : index
    %c0_24 = arith.constant 0 : index
    %31 = vector.load %arg10[%c0_23, %c0_24] : memref<8x1xf32, #tpu.memory_space<vmem>>, vector<8x1xf32>
    tpu.vector_store %arg10[%c0_23, %c0_24], %30 {strides = array<i32>} : memref<8x1xf32, #tpu.memory_space<vmem>>, vector<8x1xf32>,
    return
  }
  func.func @transform_0(%arg0: i32) -> (i32, i32) {
    %c0_i32 = arith.constant 0 : i32
    %c0_i32_0 = arith.constant 0 : i32
    return %arg0, %c0_i32 : i32, i32
  }
  func.func @transform_1(%arg0: i32) -> (i32, i32) {
    %c0_i32 = arith.constant 0 : i32
    %c0_i32_0 = arith.constant 0 : i32
    %c0_i32_1 = arith.constant 0 : i32
    return %c0_i32, %c0_i32_0 : i32, i32
  }
  func.func @transform_2(%arg0: i32) -> (i32, i32) {
    %c0_i32 = arith.constant 0 : i32
    %c0_i32_0 = arith.constant 0 : i32
    %c0_i32_1 = arith.constant 0 : i32
    return %c0_i32, %c0_i32_0 : i32, i32
  }
  func.func @transform_3(%arg0: i32) -> (i32, i32) {
    %c0_i32 = arith.constant 0 : i32
    %c0_i32_0 = arith.constant 0 : i32
    %c0_i32_1 = arith.constant 0 : i32
    return %c0_i32, %c0_i32_0 : i32, i32
  }
  func.func @transform_4(%arg0: i32) -> (i32, i32) {
    %c0_i32 = arith.constant 0 : i32
    %c0_i32_0 = arith.constant 0 : i32
    %c0_i32_1 = arith.constant 0 : i32
    return %c0_i32, %c0_i32_0 : i32, i32
  }
  func.func @transform_5(%arg0: i32) -> (i32, i32) {
    %c0_i32 = arith.constant 0 : i32
    %c0_i32_0 = arith.constant 0 : i32
    %c0_i32_1 = arith.constant 0 : i32
    return %c0_i32, %c0_i32_0 : i32, i32
  }
  func.func @transform_6(%arg0: i32) -> (i32, i32) {
    %c0_i32 = arith.constant 0 : i32
    %c0_i32_0 = arith.constant 0 : i32
    %c0_i32_1 = arith.constant 0 : i32
    return %c0_i32, %c0_i32_0 : i32, i32
  }
  func.func @transform_7(%arg0: i32) -> (i32, i32) {
    %c0_i32 = arith.constant 0 : i32
    %c0_i32_0 = arith.constant 0 : i32
    %c0_i32_1 = arith.constant 0 : i32
    return %c0_i32, %c0_i32_0 : i32, i32
  }
  func.func @transform_8(%arg0: i32) -> (i32, i32) {
    %c0_i32 = arith.constant 0 : i32
    %c0_i32_0 = arith.constant 0 : i32
    %c0_i32_1 = arith.constant 0 : i32
    return %c0_i32, %c0_i32_0 : i32, i32
  }
  func.func @transform_9(%arg0: i32) -> (i32, i32) {
    %c0_i32 = arith.constant 0 : i32
    %c0_i32_0 = arith.constant 0 : i32
    return %arg0, %c0_i32 : i32, i32
  }
}

</mosaic_0001>

<llo_original>
// kernel: bike_nn_forward.1
$region0: #{bike_nn_forward.1}
  #allocation0 [shape = 'u32[]', space=smem, size = 0x4, offset = 0x4, fixed_abs, tag = 'smem constant byte address 0x4 - core index']
  #allocation1 [shape = 'u32[144,128]{1,0:T(1,128)}', space=vmem, size = 0x12000, scoped, tag = 'internal scratch']
  #allocation2 [shape = 'f32[1,1]{1,0:T(1,128)S(1)}', space=vmem, size = 0x200, scoped, tag = 'scoped memory for bike_nn_forward.1']
  %s0 = inlined_call_operand.vmem [shape: f32[8,13], index: 0, kind: input, shape index: {}]
  %s1 = inlined_call_operand.vmem [shape: bf16[13,100], index: 1, kind: input, shape index: {}]
  %s2 = inlined_call_operand.vmem [shape: f32[1,100], index: 2, kind: input, shape index: {}]
  %s3 = inlined_call_operand.vmem [shape: bf16[100,100], index: 3, kind: input, shape index: {}]
  %s4 = inlined_call_operand.vmem [shape: f32[1,100], index: 4, kind: input, shape index: {}]
  %s5 = inlined_call_operand.vmem [shape: bf16[100,50], index: 5, kind: input, shape index: {}]
  %s6 = inlined_call_operand.vmem [shape: f32[1,50], index: 6, kind: input, shape index: {}]
  %s7 = inlined_call_operand.vmem [shape: bf16[50,1], index: 7, kind: input, shape index: {}]
  %s8 = inlined_call_operand.<no memory space> [shape: f32[1,1], index: 8, kind: input, shape index: {}]
  %s9 = inlined_call_operand.vmem [shape: f32[8,1], index: 9, kind: output, shape index: {}]
  %s10 = sld [smem:[#allocation0]]
  $region46: #{bike_nn_forward.1} parent=0
    _
  %s12 = ssub.s32 1, %s10
  %s13 = scalar_select 0, %s12, %s10
  %v14 = vstv %s8
  %15 = vst [vmem:[#allocation2] sm:$0x1] %v14
  // Predicated region
  $region2: #{bike_nn_forward.1} parent=0 // pred_check
    _
  $region3: #{bike_nn_forward.1} parent=0 // pred_check_branch
    %17 = sbr.rel (0) target = $region5
  $region4: #{bike_nn_forward.1} parent=0 // pred_region
    _
  $region5: #{bike_nn_forward.1} parent=0 // pred_fallthru
    _
  // Predicated region
  $region6: #{bike_nn_forward.1} parent=0 // pred_check
    _
  $region7: #{bike_nn_forward.1} parent=0 // pred_check_branch
    %19 = sbr.rel (0) target = $region9
  $region8: #{bike_nn_forward.1} parent=0 // pred_region
    _
  $region9: #{bike_nn_forward.1} parent=0 // pred_fallthru
    _
  // Predicated region
  $region10: #{bike_nn_forward.1} parent=0 // pred_check
    _
  $region11: #{bike_nn_forward.1} parent=0 // pred_check_branch
    %21 = sbr.rel (0) target = $region13
  $region12: #{bike_nn_forward.1} parent=0 // pred_region
    _
  $region13: #{bike_nn_forward.1} parent=0 // pred_fallthru
    _
  // Predicated region
  $region14: #{bike_nn_forward.1} parent=0 // pred_check
    _
  $region15: #{bike_nn_forward.1} parent=0 // pred_check_branch
    %23 = sbr.rel (0) target = $region17
  $region16: #{bike_nn_forward.1} parent=0 // pred_region
    _
  $region17: #{bike_nn_forward.1} parent=0 // pred_fallthru
    _
  // Predicated region
  $region18: #{bike_nn_forward.1} parent=0 // pred_check
    _
  $region19: #{bike_nn_forward.1} parent=0 // pred_check_branch
    %25 = sbr.rel (0) target = $region21
  $region20: #{bike_nn_forward.1} parent=0 // pred_region
    _
  $region21: #{bike_nn_forward.1} parent=0 // pred_fallthru
    _
  // Predicated region
  $region22: #{bike_nn_forward.1} parent=0 // pred_check
    _
  $region23: #{bike_nn_forward.1} parent=0 // pred_check_branch
    %27 = sbr.rel (0) target = $region25
  $region24: #{bike_nn_forward.1} parent=0 // pred_region
    _
  $region25: #{bike_nn_forward.1} parent=0 // pred_fallthru
    _
  // Predicated region
  $region26: #{bike_nn_forward.1} parent=0 // pred_check
    _
  $region27: #{bike_nn_forward.1} parent=0 // pred_check_branch
    %29 = sbr.rel (0) target = $region29
  $region28: #{bike_nn_forward.1} parent=0 // pred_region
    _
  $region29: #{bike_nn_forward.1} parent=0 // pred_fallthru
    _
  // Predicated region
  $region30: #{bike_nn_forward.1} parent=0 // pred_check
    _
  $region31: #{bike_nn_forward.1} parent=0 // pred_check_branch
    %31 = sbr.rel (0) target = $region33
  $region32: #{bike_nn_forward.1} parent=0 // pred_region
    _
  $region33: #{bike_nn_forward.1} parent=0 // pred_fallthru
    _
  // Predicated region
  $region34: #{bike_nn_forward.1} parent=0 // pred_check
    _
  $region35: #{bike_nn_forward.1} parent=0 // pred_check_branch
    %33 = sbr.rel (0) target = $region37
  $region36: #{bike_nn_forward.1} parent=0 // pred_region
    _
  $region37: #{bike_nn_forward.1} parent=0 // pred_fallthru
    _
  %v35 = vld [vmem:[%s0] sm:$0xff]
  %v36 = vpack.c.bf16 %v35, %v35
  %v37 = vld [vmem:[%s1] sm:$0xf]
  %v38 = vld [vmem:[%s1 + $0x4] sm:$0x7]
  %v39 = vld [vmem:[%s2] sm:$0x1]
  %v41 = vlaneseq
  %v42 = vshrl.u32 %v41, 7
  %v43 = vsub.s32 0, %v42
  %v44 = vrot.slane %v39, %v43
  %v48 = vunpack.c.l.b16 %v37
  %v49 = vunpack.c.l.b16 %v38
  %v50 = vpack.c.b16 %v49, %v48
  %vm51 = vcmask 105472
  %v53 = vsel %vm51, %v36, 0
  %vm55 = vcmask 1045504
  %vm56 = vcmask 1046528
  %v57 = vsel %vm55, 4294967295, 65535
  %v58 = vsel %vm56, %v57, 0
  %v60 = vand.u32 %v50, %v58
  %62 = vmatprep.subr.bf16.mxu0 0
  %63 = vmatpush1.bf16.msra.mxu0 0
  %64 = vmatprep.subr.bf16.mxu0 0
  %65 = vmatpush1.bf16.msra.mxu0 0
  %66 = vmatprep.subr.bf16.mxu0 0
  %67 = vmatpush1.bf16.msra.mxu0 0
  %68 = vmatprep.subr.bf16.mxu0 0
  %69 = vmatpush1.bf16.msra.mxu0 0
  %70 = vmatprep.subr.bf16.mxu0 0
  %71 = vmatpush1.bf16.msra.mxu0 0
  %72 = vmatprep.subr.bf16.mxu0 0
  %73 = vmatpush1.bf16.msra.mxu0 0
  %74 = vmatprep.subr.bf16.mxu0 0
  %75 = vmatpush1.bf16.msra.mxu0 0
  %76 = vmatprep.subr.bf16.mxu0 0
  %77 = vmatpush1.bf16.msra.mxu0 %v60
  %78 = vmatprep.subr.bf16.mxu0 0
  %79 = vmatpush2.bf16.msra.mxu0 0
  %80 = vmatprep.subr.bf16.mxu0 0
  %81 = vmatpush2.bf16.msra.mxu0 0
  %82 = vmatprep.subr.bf16.mxu0 0
  %83 = vmatpush2.bf16.msra.mxu0 0
  %84 = vmatprep.subr.bf16.mxu0 0
  %85 = vmatpush2.bf16.msra.mxu0 0
  %86 = vmatprep.subr.bf16.mxu0 0
  %87 = vmatpush2.bf16.msra.mxu0 0
  %88 = vmatprep.subr.bf16.mxu0 0
  %89 = vmatpush2.bf16.msra.mxu0 0
  %90 = vmatprep.subr.bf16.mxu0 0
  %91 = vmatpush2.bf16.msra.mxu0 0
  %92 = vmatprep.subr.bf16.mxu0 0
  %93 = vmatpush2.bf16.msra.mxu0 0
  %94 = vmatprep.mubr.bf16.mxu0 0
  %95 = vmatmul.mubr.bf16.gmra.mxu0 %v53
  %v96 = vpop.f32.mrf.mxu0
  %v97 = vadd.f32 %v44, %v96
  %v98 = vpop.f32.mrf.mxu0
  %v99 = vpop.f32.mrf.mxu0
  %v100 = vpop.f32.mrf.mxu0
  %101 = vdwg.mxu0
  %v102 = vmax.f32 %v97, 0.0
  %v103 = vpack.c.bf16 %v102, %v102
  %v104 = vld [vmem:[%s3] sm:$0xf]
  %v105 = vld [vmem:[%s3 + $0x4] sm:$0xf]
  %v106 = vld [vmem:[%s3 + $0x8] sm:$0xf]
  %v107 = vld [vmem:[%s3 + $0xc] sm:$0xf]
  %v108 = vld [vmem:[%s3 + $0x10] sm:$0xf]
  %v109 = vld [vmem:[%s3 + $0x14] sm:$0xf]
  %v110 = vld [vmem:[%s3 + $0x18] sm:$0xf]
  %v111 = vld [vmem:[%s3 + $0x1c] sm:$0xf]
  %v112 = vld [vmem:[%s3 + $0x20] sm:$0xf]
  %v113 = vld [vmem:[%s3 + $0x24] sm:$0xf]
  %v114 = vld [vmem:[%s3 + $0x28] sm:$0xf]
  %v115 = vld [vmem:[%s3 + $0x2c] sm:$0xf]
  %v116 = vld [vmem:[%s3 + $0x30] sm:$0x3]
  %v117 = vld [vmem:[%s4] sm:$0x1]
  %v119 = vlaneseq
  %v120 = vshrl.u32 %v119, 7
  %v121 = vsub.s32 0, %v120
  %v122 = vrot.slane %v117, %v121
  %v137 = vunpack.c.l.b16 %v104
  %v138 = vunpack.c.l.b16 %v105
  %v139 = vunpack.c.l.b16 %v106
  %v140 = vunpack.c.l.b16 %v107
  %v141 = vunpack.c.l.b16 %v108
  %v142 = vunpack.c.l.b16 %v109
  %v143 = vunpack.c.l.b16 %v110
  %v144 = vunpack.c.l.b16 %v111
  %v145 = vunpack.c.l.b16 %v112
  %v146 = vunpack.c.l.b16 %v113
  %v147 = vunpack.c.l.b16 %v114
  %v148 = vunpack.c.l.b16 %v115
  %v149 = vunpack.c.l.b16 %v116
  %v150 = vpack.c.b16 %v138, %v137
  %v151 = vpack.c.b16 %v140, %v139
  %v152 = vpack.c.b16 %v142, %v141
  %v153 = vpack.c.b16 %v144, %v143
  %v154 = vpack.c.b16 %v146, %v145
  %v155 = vpack.c.b16 %v148, %v147
  %v156 = vpack.c.b16 %v149, %v149
  %vm163 = vcmask 818176
  %v165 = vsel %vm163, %v103, 0
  %vm167 = vcmask 1041408
  %v169 = vsel %vm167, %v156, 0
  %171 = vmatprep.subr.bf16.mxu0 0
  %172 = vmatpush1.bf16.msra.mxu0 0
  %173 = vmatprep.subr.bf16.mxu0 0
  %174 = vmatpush1.bf16.msra.mxu0 %v169
  %175 = vmatprep.subr.bf16.mxu0 0
  %176 = vmatpush1.bf16.msra.mxu0 %v155
  %177 = vmatprep.subr.bf16.mxu0 0
  %178 = vmatpush1.bf16.msra.mxu0 %v154
  %179 = vmatprep.subr.bf16.mxu0 0
  %180 = vmatpush1.bf16.msra.mxu0 %v153
  %181 = vmatprep.subr.bf16.mxu0 0
  %182 = vmatpush1.bf16.msra.mxu0 %v152
  %183 = vmatprep.subr.bf16.mxu0 0
  %184 = vmatpush1.bf16.msra.mxu0 %v151
  %185 = vmatprep.subr.bf16.mxu0 0
  %186 = vmatpush1.bf16.msra.mxu0 %v150
  %187 = vmatprep.subr.bf16.mxu0 0
  %188 = vmatpush2.bf16.msra.mxu0 0
  %189 = vmatprep.subr.bf16.mxu0 0
  %190 = vmatpush2.bf16.msra.mxu0 0
  %191 = vmatprep.subr.bf16.mxu0 0
  %192 = vmatpush2.bf16.msra.mxu0 0
  %193 = vmatprep.subr.bf16.mxu0 0
  %194 = vmatpush2.bf16.msra.mxu0 0
  %195 = vmatprep.subr.bf16.mxu0 0
  %196 = vmatpush2.bf16.msra.mxu0 0
  %197 = vmatprep.subr.bf16.mxu0 0
  %198 = vmatpush2.bf16.msra.mxu0 0
  %199 = vmatprep.subr.bf16.mxu0 0
  %200 = vmatpush2.bf16.msra.mxu0 0
  %201 = vmatprep.subr.bf16.mxu0 0
  %202 = vmatpush2.bf16.msra.mxu0 0
  %203 = vmatprep.mubr.bf16.mxu0 0
  %204 = vmatmul.mubr.bf16.gmra.mxu0 %v165
  %v205 = vpop.f32.mrf.mxu0
  %v206 = vadd.f32 %v122, %v205
  %v207 = vpop.f32.mrf.mxu0
  %v208 = vpop.f32.mrf.mxu0
  %v209 = vpop.f32.mrf.mxu0
  %210 = vdwg.mxu0
  %v211 = vmax.f32 %v206, 0.0
  %v212 = vpack.c.bf16 %v211, %v211
  %v213 = vld [vmem:[%s5] sm:$0xf]
  %v214 = vld [vmem:[%s5 + $0x4] sm:$0xf]
  %v215 = vld [vmem:[%s5 + $0x8] sm:$0xf]
  %v216 = vld [vmem:[%s5 + $0xc] sm:$0xf]
  %v217 = vld [vmem:[%s5 + $0x10] sm:$0xf]
  %v218 = vld [vmem:[%s5 + $0x14] sm:$0xf]
  %v219 = vld [vmem:[%s5 + $0x18] sm:$0xf]
  %v220 = vld [vmem:[%s5 + $0x1c] sm:$0xf]
  %v221 = vld [vmem:[%s5 + $0x20] sm:$0xf]
  %v222 = vld [vmem:[%s5 + $0x24] sm:$0xf]
  %v223 = vld [vmem:[%s5 + $0x28] sm:$0xf]
  %v224 = vld [vmem:[%s5 + $0x2c] sm:$0xf]
  %v225 = vld [vmem:[%s5 + $0x30] sm:$0x3]
  %v226 = vld [vmem:[%s6] sm:$0x1]
  %v228 = vlaneseq
  %v229 = vshrl.u32 %v228, 7
  %v230 = vsub.s32 0, %v229
  %v231 = vrot.slane %v226, %v230
  %v246 = vunpack.c.l.b16 %v213
  %v247 = vunpack.c.l.b16 %v214
  %v248 = vunpack.c.l.b16 %v215
  %v249 = vunpack.c.l.b16 %v216
  %v250 = vunpack.c.l.b16 %v217
  %v251 = vunpack.c.l.b16 %v218
  %v252 = vunpack.c.l.b16 %v219
  %v253 = vunpack.c.l.b16 %v220
  %v254 = vunpack.c.l.b16 %v221
  %v255 = vunpack.c.l.b16 %v222
  %v256 = vunpack.c.l.b16 %v223
  %v257 = vunpack.c.l.b16 %v224
  %v258 = vunpack.c.l.b16 %v225
  %v259 = vpack.c.b16 %v247, %v246
  %v260 = vpack.c.b16 %v249, %v248
  %v261 = vpack.c.b16 %v251, %v250
  %v262 = vpack.c.b16 %v253, %v252
  %v263 = vpack.c.b16 %v255, %v254
  %v264 = vpack.c.b16 %v257, %v256
  %v265 = vpack.c.b16 %v258, %v258
  %v273 = vsel %vm163, %v212, 0
  %v276 = vsel %vm167, %v265, 0
  %278 = vmatprep.subr.bf16.mxu0 0
  %279 = vmatpush1.bf16.msra.mxu0 0
  %280 = vmatprep.subr.bf16.mxu0 0
  %281 = vmatpush1.bf16.msra.mxu0 %v276
  %282 = vmatprep.subr.bf16.mxu0 0
  %283 = vmatpush1.bf16.msra.mxu0 %v264
  %284 = vmatprep.subr.bf16.mxu0 0
  %285 = vmatpush1.bf16.msra.mxu0 %v263
  %286 = vmatprep.subr.bf16.mxu0 0
  %287 = vmatpush1.bf16.msra.mxu0 %v262
  %288 = vmatprep.subr.bf16.mxu0 0
  %289 = vmatpush1.bf16.msra.mxu0 %v261
  %290 = vmatprep.subr.bf16.mxu0 0
  %291 = vmatpush1.bf16.msra.mxu0 %v260
  %292 = vmatprep.subr.bf16.mxu0 0
  %293 = vmatpush1.bf16.msra.mxu0 %v259
  %294 = vmatprep.subr.bf16.mxu0 0
  %295 = vmatpush2.bf16.msra.mxu0 0
  %296 = vmatprep.subr.bf16.mxu0 0
  %297 = vmatpush2.bf16.msra.mxu0 0
  %298 = vmatprep.subr.bf16.mxu0 0
  %299 = vmatpush2.bf16.msra.mxu0 0
  %300 = vmatprep.subr.bf16.mxu0 0
  %301 = vmatpush2.bf16.msra.mxu0 0
  %302 = vmatprep.subr.bf16.mxu0 0
  %303 = vmatpush2.bf16.msra.mxu0 0
  %304 = vmatprep.subr.bf16.mxu0 0
  %305 = vmatpush2.bf16.msra.mxu0 0
  %306 = vmatprep.subr.bf16.mxu0 0
  %307 = vmatpush2.bf16.msra.mxu0 0
  %308 = vmatprep.subr.bf16.mxu0 0
  %309 = vmatpush2.bf16.msra.mxu0 0
  %310 = vmatprep.mubr.bf16.mxu0 0
  %311 = vmatmul.mubr.bf16.gmra.mxu0 %v273
  %v312 = vpop.f32.mrf.mxu0
  %v313 = vadd.f32 %v231, %v312
  %v314 = vpop.f32.mrf.mxu0
  %v315 = vpop.f32.mrf.mxu0
  %v316 = vpop.f32.mrf.mxu0
  %317 = vdwg.mxu0
  %v318 = vmax.f32 %v313, 0.0
  %v319 = vpack.c.bf16 %v318, %v318
  %v320 = vld [vmem:[%s7] sm:$0xf]
  %v321 = vld [vmem:[%s7 + $0x4] sm:$0xf]
  %v322 = vld [vmem:[%s7 + $0x8] sm:$0xf]
  %v323 = vld [vmem:[%s7 + $0xc] sm:$0xf]
  %v324 = vld [vmem:[%s7 + $0x10] sm:$0xf]
  %v325 = vld [vmem:[%s7 + $0x14] sm:$0xf]
  %v326 = vld [vmem:[%s7 + $0x18] sm:$0x1]
  %v327 = vld [vmem:[#allocation2] sm:$0x1]
  %v329 = vlaneseq
  %v330 = vshrl.u32 %v329, 7
  %v331 = vsub.s32 0, %v330
  %v332 = vrot.slane %v327, %v331
  %v341 = vunpack.c.l.b16 %v320
  %v342 = vunpack.c.l.b16 %v321
  %v343 = vunpack.c.l.b16 %v322
  %v344 = vunpack.c.l.b16 %v323
  %v345 = vunpack.c.l.b16 %v324
  %v346 = vunpack.c.l.b16 %v325
  %v347 = vunpack.c.l.b16 %v326
  %v348 = vpack.c.b16 %v342, %v341
  %v349 = vpack.c.b16 %v344, %v343
  %v350 = vpack.c.b16 %v346, %v345
  %v351 = vpack.c.b16 %v347, %v347
  %vm355 = vcmask 408576
  %v357 = vsel %vm355, %v319, 0
  %vm359 = vcmask 1040384
  %v361 = vsel %vm359, %v351, 0
  %363 = vmatprep.subr.bf16.mxu0 0
  %364 = vmatpush1.bf16.msra.mxu0 0
  %365 = vmatprep.subr.bf16.mxu0 0
  %366 = vmatpush1.bf16.msra.mxu0 0
  %367 = vmatprep.subr.bf16.mxu0 0
  %368 = vmatpush1.bf16.msra.mxu0 0
  %369 = vmatprep.subr.bf16.mxu0 0
  %370 = vmatpush1.bf16.msra.mxu0 0
  %371 = vmatprep.subr.bf16.mxu0 0
  %372 = vmatpush1.bf16.msra.mxu0 %v361
  %373 = vmatprep.subr.bf16.mxu0 0
  %374 = vmatpush1.bf16.msra.mxu0 %v350
  %375 = vmatprep.subr.bf16.mxu0 0
  %376 = vmatpush1.bf16.msra.mxu0 %v349
  %377 = vmatprep.subr.bf16.mxu0 0
  %378 = vmatpush1.bf16.msra.mxu0 %v348
  %379 = vmatprep.subr.bf16.mxu0 0
  %380 = vmatpush2.bf16.msra.mxu0 0
  %381 = vmatprep.subr.bf16.mxu0 0
  %382 = vmatpush2.bf16.msra.mxu0 0
  %383 = vmatprep.subr.bf16.mxu0 0
  %384 = vmatpush2.bf16.msra.mxu0 0
  %385 = vmatprep.subr.bf16.mxu0 0
  %386 = vmatpush2.bf16.msra.mxu0 0
  %387 = vmatprep.subr.bf16.mxu0 0
  %388 = vmatpush2.bf16.msra.mxu0 0
  %389 = vmatprep.subr.bf16.mxu0 0
  %390 = vmatpush2.bf16.msra.mxu0 0
  %391 = vmatprep.subr.bf16.mxu0 0
  %392 = vmatpush2.bf16.msra.mxu0 0
  %393 = vmatprep.subr.bf16.mxu0 0
  %394 = vmatpush2.bf16.msra.mxu0 0
  %395 = vmatprep.mubr.bf16.mxu0 0
  %396 = vmatmul.mubr.bf16.gmra.mxu0 %v357
  %v397 = vpop.f32.mrf.mxu0
  %v398 = vadd.f32 %v332, %v397
  %v399 = vpop.f32.mrf.mxu0
  %v400 = vpop.f32.mrf.mxu0
  %v401 = vpop.f32.mrf.mxu0
  %402 = vdwg.mxu0
  %vm403 = vcmask 7168
  %404 = vst.msk [vmem:[%s9] sm:$0xff] %vm403, %v398
  // Predicated region
  $region38: #{bike_nn_forward.1} parent=0 // pred_check
    _
  $region39: #{bike_nn_forward.1} parent=0 // pred_check_branch
    %406 = sbr.rel (0) target = $region41
  $region40: #{bike_nn_forward.1} parent=0 // pred_region
    _
  $region41: #{bike_nn_forward.1} parent=0 // pred_fallthru
    _
  // Predicated region
  $region42: #{bike_nn_forward.1} parent=0 // pred_check
    _
  $region43: #{bike_nn_forward.1} parent=0 // pred_check_branch
    %408 = sbr.rel (0) target = $region45
  $region44: #{bike_nn_forward.1} parent=0 // pred_region
    _
  $region45: #{bike_nn_forward.1} parent=0 // pred_fallthru
    _

</llo_original>
